<compile_context>
chip_gen: v7x
topology: tpu7x:2x2x1
jax: 0.10.0
libtpu: 0.0.40
codegen_flags: <defaults>
</compile_context>

<pallas_src>
import functools

import jax
import jax.numpy as jnp
from jax.experimental import pallas as pl
from jax.experimental.pallas import tpu as pltpu

# ----------------------------------------------------------------------------
# Synthetic hyper-parameters consistent with TCNPolicyModel.__init__
# ----------------------------------------------------------------------------
X_DIM = 8                                   # x_t features
A_DIM = 4                                   # a_t features
SEQ_LEN = 8                                 # history length (x_prev rows)
ADAPT_FC_HIDDENS = (32, 32)                 # adapt_fcnet_hiddens
CONV_PARAMS = ((32, 4, 2), (16, 3, 1))      # (num_filters, kernel_size, stride)
ENCODING_SIZE = 8
POLICY_HIDDENS = (32, 32)
NUM_OUTPUTS = 2 * A_DIM                     # twice the action size (SAC mean/std)


def _round_up(n, m):
    return (n + m - 1) // m * m


# Packed input slab: [x_prev | a_prev | x_t | a_t | zero-pad] -> 128 lanes.
_RAW_IN = SEQ_LEN * X_DIM + SEQ_LEN * A_DIM + X_DIM + A_DIM
PACK_DIM = _round_up(_RAW_IN, 128)

KERNEL_PARAM_ORDER = [
    "win1", "b1", "w2", "b2",
    "wc1", "bc1", "wc2", "bc2",
    "wp1in", "wp1h", "p1b",
    "p2w", "p2b", "ow", "ob",
]


# ----------------------------------------------------------------------------
# Pallas kernel: 8 batch-major matmuls, f32 accumulation / f32 tanh
# ----------------------------------------------------------------------------
def _tcn_policy_kernel(xin_ref,
                       win1_ref, b1_ref, w2_ref, b2_ref,
                       wc1_ref, bc1_ref, wc2_ref, bc2_ref,
                       wp1in_ref, wp1h_ref, p1b_ref,
                       p2w_ref, p2b_ref, ow_ref, ob_ref,
                       o_ref):
    def mm(a, w_ref):
        w = w_ref[...]
        # Operands in the weights' dtype (bf16 fast path / f32 exact path);
        # accumulation always f32.
        return jnp.dot(a.astype(w.dtype), w, preferred_element_type=jnp.float32)

    xin = xin_ref[...]

    # Adaptation MLP over all L timesteps at once (block-diagonal weights,
    # embedded in the packed 128-lane input slab -> full K=128 contraction).
    h = jnp.tanh(mm(xin, win1_ref) + b1_ref[...])
    h = jnp.tanh(mm(h, w2_ref) + b2_ref[...])

    # TCN Conv1d layers as widened (tap/position-stacked) dense matmuls.
    h = jnp.tanh(mm(h, wc1_ref) + bc1_ref[...])
    h = jnp.tanh(mm(h, wc2_ref) + bc2_ref[...])

    # Policy MLP; encoder and concat(x_t, a_t, enc) are folded into the two
    # weight matrices of layer 1 (wp1in acts on the packed slab, wp1h on h).
    p = jnp.tanh(mm(xin, wp1in_ref) + mm(h, wp1h_ref) + p1b_ref[...])
    p = jnp.tanh(mm(p, p2w_ref) + p2b_ref[...])
    o_ref[...] = (mm(p, ow_ref) + ob_ref[...]).astype(o_ref.dtype)


# ----------------------------------------------------------------------------
# Batch-tile chooser: big tiles, but avoid a nearly-empty last tile
# ----------------------------------------------------------------------------
def _choose_tile(batch, block_b):
    b8 = _round_up(batch, 8)
    if b8 <= block_b:
        return b8                                     # single tile, no waste
    best_tb = block_b
    best_pad = _round_up(batch, block_b) - batch
    tb = block_b
    while tb >= 8:
        padded = _round_up(batch, tb)
        pad = padded - batch
        if pad * 8 <= padded:                         # waste <= ~12.5%
            return tb
        if pad < best_pad:
            best_tb, best_pad = tb, pad
        tb -= 8
    return best_tb


# ----------------------------------------------------------------------------
# Wrapper: one packed input slab, batch grid, VMEM-resident weights
# ----------------------------------------------------------------------------
@functools.partial(jax.jit, static_argnames=("block_b",))
def tcn_policy_forward(weights, x_t, a_t, x_prev, a_prev, block_b=1024):
    B = x_t.shape[0]
    in_dtype = weights["win1"].dtype

    pad_cols = PACK_DIM - (x_prev.shape[1] + a_prev.shape[1]
                           + x_t.shape[1] + a_t.shape[1])
    xin = jnp.concatenate(
        [x_prev, a_prev, x_t, a_t,
         jnp.zeros((B, pad_cols), x_t.dtype)], axis=1).astype(in_dtype)

    tb = _choose_tile(B, block_b)                     # multiple of 8
    Bp = _round_up(B, tb)
    if Bp != B:                                       # zero-pad ragged batch
        xin = jnp.pad(xin, ((0, Bp - B), (0, 0)))

    flat_w = [weights[k] for k in KERNEL_PARAM_ORDER]

    in_specs = ([pl.BlockSpec((tb, PACK_DIM), lambda i: (i, 0))]
                # weights: full-array blocks, constant index map -> VMEM-resident
                + [pl.BlockSpec(w.shape, lambda i: (0, 0)) for w in flat_w])

    out = pl.pallas_call(
        _tcn_policy_kernel,
        grid=(Bp // tb,),
        out_shape=jax.ShapeDtypeStruct((Bp, NUM_OUTPUTS), jnp.float32),
        in_specs=in_specs,
        out_specs=pl.BlockSpec((tb, NUM_OUTPUTS), lambda i: (i, 0)),
        compiler_params=pltpu.CompilerParams(
            dimension_semantics=("parallel",),
            vmem_limit_bytes=32 * 1024 * 1024),
    )(xin, *flat_w)
    return out[:B]


# ----------------------------------------------------------------------------
# Host-side weight preparation (done once)
# ----------------------------------------------------------------------------
def _widen_conv(w, l_in, stride):
    """(K, Cin, Cout) conv weight -> (l_in*Cin, l_out*Cout) dense weight acting
    on a timestep-major-in-lanes (B, l_in*Cin) activation slab."""
    k, cin, cout = w.shape
    l_out = (l_in - k) // stride + 1
    big = jnp.zeros((l_in * cin, l_out * cout), jnp.float32)
    for lo in range(l_out):
        for kk in range(k):
            li = lo * stride + kk
            big = big.at[li * cin:(li + 1) * cin,
                         lo * cout:(lo + 1) * cout].set(w[kk])
    return big


def prepare_params(params, compute_dtype=jnp.bfloat16):
    """Convert module-layout params into the packed/widened kernel layout."""
    xd, ad, L = X_DIM, A_DIM, SEQ_LEN
    (nf1, k1, s1), (nf2, k2, s2) = CONV_PARAMS
    H1 = ADAPT_FC_HIDDENS[0]
    f32 = jnp.float32

    def eye(n):
        return jnp.eye(n, dtype=f32)

    # Column offsets inside the packed (B, PACK_DIM) input slab.
    off_xp = 0
    off_ap = L * xd
    off_xt = off_ap + L * ad
    off_at = off_xt + xd

    w = {}
    # Per-timestep FC layer 1 -> block-diagonal over L timesteps, embedded in
    # the packed slab (zero rows for the x_t / a_t / padding columns).
    win1 = jnp.zeros((PACK_DIM, L * H1), f32)
    win1 = win1.at[off_xp:off_xp + L * xd].set(jnp.kron(eye(L), params["fc1_w"][:xd]))
    win1 = win1.at[off_ap:off_ap + L * ad].set(jnp.kron(eye(L), params["fc1_w"][xd:]))
    w["win1"] = win1
    w["b1"] = jnp.tile(params["fc1_b"], (1, L))
    w["w2"] = jnp.kron(eye(L), params["fc2_w"])
    w["b2"] = jnp.tile(params["fc2_b"], (1, L))

    # Conv1d layers -> widened tap/position-stacked dense weights.
    l1 = (L - k1) // s1 + 1
    w["wc1"] = _widen_conv(params["c1_w"], L, s1)
    w["bc1"] = jnp.tile(params["c1_b"], (1, l1))
    l2 = (l1 - k2) // s2 + 1
    w["wc2"] = _widen_conv(params["c2_w"], l1, s2)
    w["bc2"] = jnp.tile(params["c2_b"], (1, l2))

    # Encoder (torch NCW-flatten order folded into a row permutation), then
    # folded into policy layer 1: enc @ p1e == h @ (wenc_perm @ p1e), and
    # benc @ p1e is added into the policy bias.  Exact (no activation between).
    perm = jnp.asarray([c * l2 + l for l in range(l2) for c in range(nf2)],
                       jnp.int32)
    wenc = params["enc_w"][perm, :]                       # (l2*nf2, ENC)
    p1e = params["p1_w"][xd + ad:]                        # (ENC, P1)
    w["wp1h"] = wenc @ p1e                                # (l2*nf2, P1)
    w["p1b"] = params["p1_b"] + params["enc_b"] @ p1e

    # Policy layer 1 part acting on the packed input slab (x_t / a_t rows).
    wp1in = jnp.zeros((PACK_DIM, POLICY_HIDDENS[0]), f32)
    wp1in = wp1in.at[off_xt:off_xt + xd].set(params["p1_w"][:xd])
    wp1in = wp1in.at[off_at:off_at + ad].set(params["p1_w"][xd:xd + ad])
    w["wp1in"] = wp1in

    w["p2w"], w["p2b"] = params["p2_w"], params["p2_b"]
    w["ow"], w["ob"] = params["out_w"], params["out_b"]

    # Matmul weights in compute_dtype (bf16 fast path / f32 exact path);
    # biases stay f32 (added after the f32-accumulated dot).
    matmul_keys = ("win1", "w2", "wc1", "wc2", "wp1in", "wp1h", "p2w", "ow")
    return {k: (v.astype(compute_dtype) if k in matmul_keys else v.astype(f32))
            for k, v in w.items()}


# ----------------------------------------------------------------------------
# Deterministic synthetic parameter init (shapes from __init__)
# ----------------------------------------------------------------------------
def init_params(key):
    def linear(k, fin, fout):
        kw, kb = jax.random.split(k)
        s = 1.0 / float(fin) ** 0.5
        w = jax.random.uniform(kw, (fin, fout), jnp.float32, -s, s)
        b = jax.random.uniform(kb, (1, fout), jnp.float32, -s, s)
        return w, b

    def conv(k, cin, cout, ksize):
        # stored as (K, Cin, Cout): transpose of torch's (Cout, Cin, K)
        kw, kb = jax.random.split(k)
        s = 1.0 / float(cin * ksize) ** 0.5
        w = jax.random.uniform(kw, (ksize, cin, cout), jnp.float32, -s, s)
        b = jax.random.uniform(kb, (1, cout), jnp.float32, -s, s)
        return w, b

    keys = jax.random.split(key, 8)
    p = {}
    d_in = X_DIM + A_DIM
    p["fc1_w"], p["fc1_b"] = linear(keys[0], d_in, ADAPT_FC_HIDDENS[0])
    p["fc2_w"], p["fc2_b"] = linear(keys[1], ADAPT_FC_HIDDENS[0],
                                    ADAPT_FC_HIDDENS[1])
    seq = SEQ_LEN
    (nf1, k1, s1), (nf2, k2, s2) = CONV_PARAMS
    p["c1_w"], p["c1_b"] = conv(keys[2], ADAPT_FC_HIDDENS[-1], nf1, k1)
    seq = (seq - k1) // s1 + 1
    p["c2_w"], p["c2_b"] = conv(keys[3], nf1, nf2, k2)
    seq = (seq - k2) // s2 + 1
    p["enc_w"], p["enc_b"] = linear(keys[4], seq * nf2, ENCODING_SIZE)
    p_in = ENCODING_SIZE + X_DIM + A_DIM
    p["p1_w"], p["p1_b"] = linear(keys[5], p_in, POLICY_HIDDENS[0])
    p["p2_w"], p["p2_b"] = linear(keys[6], POLICY_HIDDENS[0], POLICY_HIDDENS[1])
    p["out_w"], p["out_b"] = linear(keys[7], POLICY_HIDDENS[1], NUM_OUTPUTS)
    return p


# ----------------------------------------------------------------------------
# Pure-JAX reference mirroring the torch forward (correctness check)
# ----------------------------------------------------------------------------
def forward_ref(params, x_t, a_t, x_prev, a_prev):
    B, xd = x_t.shape
    ad = a_t.shape[1]
    x_p = x_prev.reshape(B, -1, xd)
    a_p = a_prev.reshape(B, -1, ad)
    h = jnp.concatenate([x_p, a_p], axis=2)
    h = jnp.tanh(h @ params["fc1_w"] + params["fc1_b"])
    h = jnp.tanh(h @ params["fc2_w"] + params["fc2_b"])

    def conv(h, w, b, stride):                   # h: (B, L, Cin), w: (K, Cin, Cout)
        K = w.shape[0]
        l_out = (h.shape[1] - K) // stride + 1
        outs = []
        for l in range(l_out):
            acc = b
            for k in range(K):
                acc = acc + h[:, l * stride + k, :] @ w[k]
            outs.append(jnp.tanh(acc))
        return jnp.stack(outs, axis=1)

    (_, k1, s1), (_, k2, s2) = CONV_PARAMS
    h = conv(h, params["c1_w"], params["c1_b"], s1)
    h = conv(h, params["c2_w"], params["c2_b"], s2)
    flat = jnp.transpose(h, (0, 2, 1)).reshape(B, -1)     # torch NCW Flatten
    enc = flat @ params["enc_w"] + params["enc_b"]
    pin = jnp.concatenate([x_t, a_t, enc], axis=1)
    p = jnp.tanh(pin @ params["p1_w"] + params["p1_b"])
    p = jnp.tanh(p @ params["p2_w"] + params["p2_b"])
    return p @ params["out_w"] + params["out_b"]


if __name__ == "__main__":
    B = 2
    key = jax.random.PRNGKey(0)
    kx, ka, kxp, kap = jax.random.split(key, 4)
    x_t = jax.random.normal(kx, (B, X_DIM), jnp.float32)
    a_t = jax.random.normal(ka, (B, A_DIM), jnp.float32)
    x_prev = jax.random.normal(kxp, (B, SEQ_LEN * X_DIM), jnp.float32)
    a_prev = jax.random.normal(kap, (B, SEQ_LEN * A_DIM), jnp.float32)

    params = init_params(jax.random.PRNGKey(42))
    ref = forward_ref(params, x_t, a_t, x_prev, a_prev)

    # Exact-math path (f32 weights): validates the packing / widening / fold.
    w_f32 = prepare_params(params, compute_dtype=jnp.float32)
    out_f32 = jax.block_until_ready(
        tcn_policy_forward(w_f32, x_t, a_t, x_prev, a_prev))
    assert out_f32.shape == (B, NUM_OUTPUTS)
    assert jnp.allclose(out_f32, ref, atol=1e-5, rtol=1e-5)

    # Fast path (bf16 matmul operands, f32 accumulation / activations).
    w_bf16 = prepare_params(params)
    out_bf16 = jax.block_until_ready(
        tcn_policy_forward(w_bf16, x_t, a_t, x_prev, a_prev))
    assert out_bf16.shape == (B, NUM_OUTPUTS)
    assert jnp.allclose(out_bf16, ref, atol=5e-2, rtol=5e-2)

    print("KERNEL_OK")
</pallas_src>

<mosaic_0001>
module attributes {stable_mosaic.version = 11 : i64} {
  func.func @_tcn_policy_kernel(%arg0: i32, %arg1: memref<8x128xf32, #tpu.memory_space<vmem>>, %arg2: memref<128x256xf32, #tpu.memory_space<vmem>>, %arg3: memref<1x256xf32, #tpu.memory_space<vmem>>, %arg4: memref<256x256xf32, #tpu.memory_space<vmem>>, %arg5: memref<1x256xf32, #tpu.memory_space<vmem>>, %arg6: memref<256x96xf32, #tpu.memory_space<vmem>>, %arg7: memref<1x96xf32, #tpu.memory_space<vmem>>, %arg8: memref<96x16xf32, #tpu.memory_space<vmem>>, %arg9: memref<1x16xf32, #tpu.memory_space<vmem>>, %arg10: memref<128x32xf32, #tpu.memory_space<vmem>>, %arg11: memref<16x32xf32, #tpu.memory_space<vmem>>, %arg12: memref<1x32xf32, #tpu.memory_space<vmem>>, %arg13: memref<32x32xf32, #tpu.memory_space<vmem>>, %arg14: memref<1x32xf32, #tpu.memory_space<vmem>>, %arg15: memref<32x8xf32, #tpu.memory_space<vmem>>, %arg16: memref<1x8xf32, #tpu.memory_space<vmem>>, %arg17: memref<8x8xf32, #tpu.memory_space<vmem>>) attributes {dimension_semantics = [#tpu.dimension_semantics<parallel>], iteration_bounds = array<i64: 1>, scalar_prefetch = 0 : i64, scratch_operands = 0 : i64, tpu.core_type = #tpu.core_type<tc>, window_params = [{transform_indices = @transform_0, window_bounds = array<i64: 8, 128>}, {pipeline_mode = #tpu.pipeline_mode<synchronous>, transform_indices = @transform_1, window_bounds = array<i64: 128, 256>}, {pipeline_mode = #tpu.pipeline_mode<synchronous>, transform_indices = @transform_2, window_bounds = array<i64: 1, 256>}, {pipeline_mode = #tpu.pipeline_mode<synchronous>, transform_indices = @transform_3, window_bounds = array<i64: 256, 256>}, {pipeline_mode = #tpu.pipeline_mode<synchronous>, transform_indices = @transform_4, window_bounds = array<i64: 1, 256>}, {pipeline_mode = #tpu.pipeline_mode<synchronous>, transform_indices = @transform_5, window_bounds = array<i64: 256, 96>}, {pipeline_mode = #tpu.pipeline_mode<synchronous>, transform_indices = @transform_6, window_bounds = array<i64: 1, 96>}, {pipeline_mode = #tpu.pipeline_mode<synchronous>, transform_indices = @transform_7, window_bounds = array<i64: 96, 16>}, {pipeline_mode = #tpu.pipeline_mode<synchronous>, transform_indices = @transform_8, window_bounds = array<i64: 1, 16>}, {pipeline_mode = #tpu.pipeline_mode<synchronous>, transform_indices = @transform_9, window_bounds = array<i64: 128, 32>}, {pipeline_mode = #tpu.pipeline_mode<synchronous>, transform_indices = @transform_10, window_bounds = array<i64: 16, 32>}, {pipeline_mode = #tpu.pipeline_mode<synchronous>, transform_indices = @transform_11, window_bounds = array<i64: 1, 32>}, {pipeline_mode = #tpu.pipeline_mode<synchronous>, transform_indices = @transform_12, window_bounds = array<i64: 32, 32>}, {pipeline_mode = #tpu.pipeline_mode<synchronous>, transform_indices = @transform_13, window_bounds = array<i64: 1, 32>}, {pipeline_mode = #tpu.pipeline_mode<synchronous>, transform_indices = @transform_14, window_bounds = array<i64: 32, 8>}, {pipeline_mode = #tpu.pipeline_mode<synchronous>, transform_indices = @transform_15, window_bounds = array<i64: 1, 8>}, {transform_indices = @transform_16, window_bounds = array<i64: 8, 8>}]} {
    %c0 = arith.constant 0 : index
    %c0_0 = arith.constant 0 : index
    %0 = vector.load %arg1[%c0, %c0_0] : memref<8x128xf32, #tpu.memory_space<vmem>>, vector<8x128xf32>
    %c0_1 = arith.constant 0 : index
    %c0_2 = arith.constant 0 : index
    %1 = vector.load %arg2[%c0_1, %c0_2] : memref<128x256xf32, #tpu.memory_space<vmem>>, vector<128x256xf32>
    %cst = arith.constant dense<0.000000e+00> : vector<8x256xf32>
    %2 = tpu.matmul %0, %1, %cst {dimension_numbers = #tpu.dot_dimension_numbers<[1], [0], [0], [1], [0, 0, 1, 1], [], []>} : vector<8x128xf32>, vector<128x256xf32>, vector<8x256xf32> -> vector<8x256xf32>
    %c0_3 = arith.constant 0 : index
    %c0_4 = arith.constant 0 : index
    %3 = vector.load %arg3[%c0_3, %c0_4] : memref<1x256xf32, #tpu.memory_space<vmem>>, vector<1x256xf32>
    %4 = vector.broadcast %3 : vector<1x256xf32> to vector<8x256xf32>
    %5 = arith.addf %2, %4 : vector<8x256xf32>
    %6 = math.tanh %5 : vector<8x256xf32>
    %c0_5 = arith.constant 0 : index
    %c0_6 = arith.constant 0 : index
    %7 = vector.load %arg4[%c0_5, %c0_6] : memref<256x256xf32, #tpu.memory_space<vmem>>, vector<256x256xf32>
    %cst_7 = arith.constant dense<0.000000e+00> : vector<8x256xf32>
    %8 = tpu.matmul %6, %7, %cst_7 {dimension_numbers = #tpu.dot_dimension_numbers<[1], [0], [0], [1], [0, 0, 1, 1], [], []>} : vector<8x256xf32>, vector<256x256xf32>, vector<8x256xf32> -> vector<8x256xf32>
    %c0_8 = arith.constant 0 : index
    %c0_9 = arith.constant 0 : index
    %9 = vector.load %arg5[%c0_8, %c0_9] : memref<1x256xf32, #tpu.memory_space<vmem>>, vector<1x256xf32>
    %10 = vector.broadcast %9 : vector<1x256xf32> to vector<8x256xf32>
    %11 = arith.addf %8, %10 : vector<8x256xf32>
    %12 = math.tanh %11 : vector<8x256xf32>
    %c0_10 = arith.constant 0 : index
    %c0_11 = arith.constant 0 : index
    %13 = vector.load %arg6[%c0_10, %c0_11] : memref<256x96xf32, #tpu.memory_space<vmem>>, vector<256x96xf32>
    %cst_12 = arith.constant dense<0.000000e+00> : vector<8x96xf32>
    %14 = tpu.matmul %12, %13, %cst_12 {dimension_numbers = #tpu.dot_dimension_numbers<[1], [0], [0], [1], [0, 0, 1, 1], [], []>} : vector<8x256xf32>, vector<256x96xf32>, vector<8x96xf32> -> vector<8x96xf32>
    %c0_13 = arith.constant 0 : index
    %c0_14 = arith.constant 0 : index
    %15 = vector.load %arg7[%c0_13, %c0_14] : memref<1x96xf32, #tpu.memory_space<vmem>>, vector<1x96xf32>
    %16 = vector.broadcast %15 : vector<1x96xf32> to vector<8x96xf32>
    %17 = arith.addf %14, %16 : vector<8x96xf32>
    %18 = math.tanh %17 : vector<8x96xf32>
    %c0_15 = arith.constant 0 : index
    %c0_16 = arith.constant 0 : index
    %19 = vector.load %arg8[%c0_15, %c0_16] : memref<96x16xf32, #tpu.memory_space<vmem>>, vector<96x16xf32>
    %cst_17 = arith.constant dense<0.000000e+00> : vector<8x16xf32>
    %20 = tpu.matmul %18, %19, %cst_17 {dimension_numbers = #tpu.dot_dimension_numbers<[1], [0], [0], [1], [0, 0, 1, 1], [], []>} : vector<8x96xf32>, vector<96x16xf32>, vector<8x16xf32> -> vector<8x16xf32>
    %c0_18 = arith.constant 0 : index
    %c0_19 = arith.constant 0 : index
    %21 = vector.load %arg9[%c0_18, %c0_19] : memref<1x16xf32, #tpu.memory_space<vmem>>, vector<1x16xf32>
    %22 = vector.broadcast %21 : vector<1x16xf32> to vector<8x16xf32>
    %23 = arith.addf %20, %22 : vector<8x16xf32>
    %24 = math.tanh %23 : vector<8x16xf32>
    %c0_20 = arith.constant 0 : index
    %c0_21 = arith.constant 0 : index
    %25 = vector.load %arg10[%c0_20, %c0_21] : memref<128x32xf32, #tpu.memory_space<vmem>>, vector<128x32xf32>
    %cst_22 = arith.constant dense<0.000000e+00> : vector<8x32xf32>
    %26 = tpu.matmul %0, %25, %cst_22 {dimension_numbers = #tpu.dot_dimension_numbers<[1], [0], [0], [1], [0, 0, 1, 1], [], []>} : vector<8x128xf32>, vector<128x32xf32>, vector<8x32xf32> -> vector<8x32xf32>
    %c0_23 = arith.constant 0 : index
    %c0_24 = arith.constant 0 : index
    %27 = vector.load %arg11[%c0_23, %c0_24] : memref<16x32xf32, #tpu.memory_space<vmem>>, vector<16x32xf32>
    %cst_25 = arith.constant dense<0.000000e+00> : vector<8x32xf32>
    %28 = tpu.matmul %24, %27, %cst_25 {dimension_numbers = #tpu.dot_dimension_numbers<[1], [0], [0], [1], [0, 0, 1, 1], [], []>} : vector<8x16xf32>, vector<16x32xf32>, vector<8x32xf32> -> vector<8x32xf32>
    %29 = arith.addf %26, %28 : vector<8x32xf32>
    %c0_26 = arith.constant 0 : index
    %c0_27 = arith.constant 0 : index
    %30 = vector.load %arg12[%c0_26, %c0_27] : memref<1x32xf32, #tpu.memory_space<vmem>>, vector<1x32xf32>
    %31 = vector.broadcast %30 : vector<1x32xf32> to vector<8x32xf32>
    %32 = arith.addf %29, %31 : vector<8x32xf32>
    %33 = math.tanh %32 : vector<8x32xf32>
    %c0_28 = arith.constant 0 : index
    %c0_29 = arith.constant 0 : index
    %34 = vector.load %arg13[%c0_28, %c0_29] : memref<32x32xf32, #tpu.memory_space<vmem>>, vector<32x32xf32>
    %cst_30 = arith.constant dense<0.000000e+00> : vector<8x32xf32>
    %35 = tpu.matmul %33, %34, %cst_30 {dimension_numbers = #tpu.dot_dimension_numbers<[1], [0], [0], [1], [0, 0, 1, 1], [], []>} : vector<8x32xf32>, vector<32x32xf32>, vector<8x32xf32> -> vector<8x32xf32>
    %c0_31 = arith.constant 0 : index
    %c0_32 = arith.constant 0 : index
    %36 = vector.load %arg14[%c0_31, %c0_32] : memref<1x32xf32, #tpu.memory_space<vmem>>, vector<1x32xf32>
    %37 = vector.broadcast %36 : vector<1x32xf32> to vector<8x32xf32>
    %38 = arith.addf %35, %37 : vector<8x32xf32>
    %39 = math.tanh %38 : vector<8x32xf32>
    %c0_33 = arith.constant 0 : index
    %c0_34 = arith.constant 0 : index
    %40 = vector.load %arg15[%c0_33, %c0_34] : memref<32x8xf32, #tpu.memory_space<vmem>>, vector<32x8xf32>
    %cst_35 = arith.constant dense<0.000000e+00> : vector<8x8xf32>
    %41 = tpu.matmul %39, %40, %cst_35 {dimension_numbers = #tpu.dot_dimension_numbers<[1], [0], [0], [1], [0, 0, 1, 1], [], []>} : vector<8x32xf32>, vector<32x8xf32>, vector<8x8xf32> -> vector<8x8xf32>
    %c0_36 = arith.constant 0 : index
    %c0_37 = arith.constant 0 : index
    %42 = vector.load %arg16[%c0_36, %c0_37] : memref<1x8xf32, #tpu.memory_space<vmem>>, vector<1x8xf32>
    %43 = vector.broadcast %42 : vector<1x8xf32> to vector<8x8xf32>
    %44 = arith.addf %41, %43 : vector<8x8xf32>
    %c0_38 = arith.constant 0 : index
    %c0_39 = arith.constant 0 : index
    %45 = vector.load %arg17[%c0_38, %c0_39] : memref<8x8xf32, #tpu.memory_space<vmem>>, vector<8x8xf32>
    tpu.vector_store %arg17[%c0_38, %c0_39], %44 {strides = array<i32>} : memref<8x8xf32, #tpu.memory_space<vmem>>, vector<8x8xf32>,
    return
  }
  func.func @transform_0(%arg0: i32) -> (i32, i32) {
    %c0_i32 = arith.constant 0 : i32
    %c0_i32_0 = arith.constant 0 : i32
    return %arg0, %c0_i32 : i32, i32
  }
  func.func @transform_1(%arg0: i32) -> (i32, i32) {
    %c0_i32 = arith.constant 0 : i32
    %c0_i32_0 = arith.constant 0 : i32
    %c0_i32_1 = arith.constant 0 : i32
    return %c0_i32, %c0_i32_0 : i32, i32
  }
  func.func @transform_2(%arg0: i32) -> (i32, i32) {
    %c0_i32 = arith.constant 0 : i32
    %c0_i32_0 = arith.constant 0 : i32
    %c0_i32_1 = arith.constant 0 : i32
    return %c0_i32, %c0_i32_0 : i32, i32
  }
  func.func @transform_3(%arg0: i32) -> (i32, i32) {
    %c0_i32 = arith.constant 0 : i32
    %c0_i32_0 = arith.constant 0 : i32
    %c0_i32_1 = arith.constant 0 : i32
    return %c0_i32, %c0_i32_0 : i32, i32
  }
  func.func @transform_4(%arg0: i32) -> (i32, i32) {
    %c0_i32 = arith.constant 0 : i32
    %c0_i32_0 = arith.constant 0 : i32
    %c0_i32_1 = arith.constant 0 : i32
    return %c0_i32, %c0_i32_0 : i32, i32
  }
  func.func @transform_5(%arg0: i32) -> (i32, i32) {
    %c0_i32 = arith.constant 0 : i32
    %c0_i32_0 = arith.constant 0 : i32
    %c0_i32_1 = arith.constant 0 : i32
    return %c0_i32, %c0_i32_0 : i32, i32
  }
  func.func @transform_6(%arg0: i32) -> (i32, i32) {
    %c0_i32 = arith.constant 0 : i32
    %c0_i32_0 = arith.constant 0 : i32
    %c0_i32_1 = arith.constant 0 : i32
    return %c0_i32, %c0_i32_0 : i32, i32
  }
  func.func @transform_7(%arg0: i32) -> (i32, i32) {
    %c0_i32 = arith.constant 0 : i32
    %c0_i32_0 = arith.constant 0 : i32
    %c0_i32_1 = arith.constant 0 : i32
    return %c0_i32, %c0_i32_0 : i32, i32
  }
  func.func @transform_8(%arg0: i32) -> (i32, i32) {
    %c0_i32 = arith.constant 0 : i32
    %c0_i32_0 = arith.constant 0 : i32
    %c0_i32_1 = arith.constant 0 : i32
    return %c0_i32, %c0_i32_0 : i32, i32
  }
  func.func @transform_9(%arg0: i32) -> (i32, i32) {
    %c0_i32 = arith.constant 0 : i32
    %c0_i32_0 = arith.constant 0 : i32
    %c0_i32_1 = arith.constant 0 : i32
    return %c0_i32, %c0_i32_0 : i32, i32
  }
  func.func @transform_10(%arg0: i32) -> (i32, i32) {
    %c0_i32 = arith.constant 0 : i32
    %c0_i32_0 = arith.constant 0 : i32
    %c0_i32_1 = arith.constant 0 : i32
    return %c0_i32, %c0_i32_0 : i32, i32
  }
  func.func @transform_11(%arg0: i32) -> (i32, i32) {
    %c0_i32 = arith.constant 0 : i32
    %c0_i32_0 = arith.constant 0 : i32
    %c0_i32_1 = arith.constant 0 : i32
    return %c0_i32, %c0_i32_0 : i32, i32
  }
  func.func @transform_12(%arg0: i32) -> (i32, i32) {
    %c0_i32 = arith.constant 0 : i32
    %c0_i32_0 = arith.constant 0 : i32
    %c0_i32_1 = arith.constant 0 : i32
    return %c0_i32, %c0_i32_0 : i32, i32
  }
  func.func @transform_13(%arg0: i32) -> (i32, i32) {
    %c0_i32 = arith.constant 0 : i32
    %c0_i32_0 = arith.constant 0 : i32
    %c0_i32_1 = arith.constant 0 : i32
    return %c0_i32, %c0_i32_0 : i32, i32
  }
  func.func @transform_14(%arg0: i32) -> (i32, i32) {
    %c0_i32 = arith.constant 0 : i32
    %c0_i32_0 = arith.constant 0 : i32
    %c0_i32_1 = arith.constant 0 : i32
    return %c0_i32, %c0_i32_0 : i32, i32
  }
  func.func @transform_15(%arg0: i32) -> (i32, i32) {
    %c0_i32 = arith.constant 0 : i32
    %c0_i32_0 = arith.constant 0 : i32
    %c0_i32_1 = arith.constant 0 : i32
    return %c0_i32, %c0_i32_0 : i32, i32
  }
  func.func @transform_16(%arg0: i32) -> (i32, i32) {
    %c0_i32 = arith.constant 0 : i32
    %c0_i32_0 = arith.constant 0 : i32
    return %arg0, %c0_i32 : i32, i32
  }
}

</mosaic_0001>

<llo_original>
// kernel: tcn_policy_forward.1
$region0: #{tcn_policy_forward.1}
  #allocation0 [shape = 'u32[]', space=smem, size = 0x4, offset = 0x4, fixed_abs, tag = 'smem constant byte address 0x4 - core index']
  #allocation1 [shape = 'u32[144,128]{1,0:T(1,128)}', space=vmem, size = 0x12000, scoped, tag = 'internal scratch']
  %s0 = inlined_call_operand.vmem [shape: f32[8,128], index: 0, kind: input, shape index: {}]
  %s1 = inlined_call_operand.vmem [shape: f32[128,256], index: 1, kind: input, shape index: {}]
  %s2 = inlined_call_operand.vmem [shape: f32[1,256], index: 2, kind: input, shape index: {}]
  %s3 = inlined_call_operand.vmem [shape: f32[256,256], index: 3, kind: input, shape index: {}]
  %s4 = inlined_call_operand.vmem [shape: f32[1,256], index: 4, kind: input, shape index: {}]
  %s5 = inlined_call_operand.vmem [shape: f32[256,96], index: 5, kind: input, shape index: {}]
  %s6 = inlined_call_operand.hbm [shape: f32[1,96], index: 6, kind: input, shape index: {}]
  %s7 = inlined_call_operand.vmem [shape: f32[96,16], index: 7, kind: input, shape index: {}]
  %s8 = inlined_call_operand.hbm [shape: f32[1,16], index: 8, kind: input, shape index: {}]
  %s9 = inlined_call_operand.vmem [shape: f32[128,32], index: 9, kind: input, shape index: {}]
  %s10 = inlined_call_operand.vmem [shape: f32[16,32], index: 10, kind: input, shape index: {}]
  %s11 = inlined_call_operand.hbm [shape: f32[1,32], index: 11, kind: input, shape index: {}]
  %s12 = inlined_call_operand.hbm [shape: f32[32,32], index: 12, kind: input, shape index: {}]
  %s13 = inlined_call_operand.hbm [shape: f32[1,32], index: 13, kind: input, shape index: {}]
  %s14 = inlined_call_operand.vmem [shape: f32[32,8], index: 14, kind: input, shape index: {}]
  %s15 = inlined_call_operand.hbm [shape: f32[1,8], index: 15, kind: input, shape index: {}]
  %s16 = inlined_call_operand.vmem [shape: f32[8,8], index: 16, kind: output, shape index: {}]
  %s17 = sld [smem:[#allocation0]]
  $region98: #{tcn_policy_forward.1} parent=0
    _
  %s19 = ssub.s32 1, %s17
  %s20 = scalar_select 0, %s19, %s17
  $region1: #{tcn_policy_forward.1} parent=0
    #allocation2 [shape = 'u8[512]{0}', space=vmem, size = 0x400, scoped, tag = 'input window, operand 6, single buffered']
    #allocation3 [shape = 's32[1]{0}', space=sflag, size = 0x4, scoped, tag = 'scoped memory for tcn_policy_forward.1']
    #allocation4 [shape = 'u8[512]{0}', space=vmem, size = 0x400, scoped, tag = 'input window, operand 8, single buffered']
    #allocation5 [shape = 's32[1]{0}', space=sflag, size = 0x4, scoped, tag = 'scoped memory for tcn_policy_forward.1']
    #allocation6 [shape = 'u8[512]{0}', space=vmem, size = 0x400, scoped, tag = 'input window, operand 11, single buffered']
    #allocation7 [shape = 'u8[16384]{0}', space=vmem, size = 0x4000, scoped, tag = 'input window, operand 12, single buffered']
    #allocation8 [shape = 's32[1]{0}', space=sflag, size = 0x4, scoped, tag = 'scoped memory for tcn_policy_forward.1']
    #allocation9 [shape = 'u8[512]{0}', space=vmem, size = 0x400, scoped, tag = 'input window, operand 13, single buffered']
    #allocation10 [shape = 'u8[512]{0}', space=vmem, size = 0x400, scoped, tag = 'input window, operand 15, single buffered']
    #allocation11 [shape = 's32[1]{0}', space=sflag, size = 0x4, scoped, tag = 'scoped memory for tcn_policy_forward.1']
    %21 = vsyncpa [#allocation3], 0
    %22 = vsyncpa [#allocation5], 0
    %23 = vsyncpa [#allocation8], 0
    %24 = vsyncpa [#allocation11], 0
    // Predicated region
    $region2: #{tcn_policy_forward.1} parent=1 // pred_check
      _
    $region3: #{tcn_policy_forward.1} parent=1 // pred_check_branch
      %26 = sbr.rel (0) target = $region5
    $region4: #{tcn_policy_forward.1} parent=1 // pred_region
      _
    $region5: #{tcn_policy_forward.1} parent=1 // pred_fallthru
      _
    // Predicated region
    $region6: #{tcn_policy_forward.1} parent=1 // pred_check
      _
    $region7: #{tcn_policy_forward.1} parent=1 // pred_check_branch
      %28 = sbr.rel (0) target = $region9
    $region8: #{tcn_policy_forward.1} parent=1 // pred_region
      _
    $region9: #{tcn_policy_forward.1} parent=1 // pred_fallthru
      _
    // Predicated region
    $region10: #{tcn_policy_forward.1} parent=1 // pred_check
      _
    $region11: #{tcn_policy_forward.1} parent=1 // pred_check_branch
      %30 = sbr.rel (0) target = $region13
    $region12: #{tcn_policy_forward.1} parent=1 // pred_region
      _
    $region13: #{tcn_policy_forward.1} parent=1 // pred_fallthru
      _
    // Predicated region
    $region14: #{tcn_policy_forward.1} parent=1 // pred_check
      _
    $region15: #{tcn_policy_forward.1} parent=1 // pred_check_branch
      %32 = sbr.rel (0) target = $region17
    $region16: #{tcn_policy_forward.1} parent=1 // pred_region
      _
    $region17: #{tcn_policy_forward.1} parent=1 // pred_fallthru
      _
    // Predicated region
    $region18: #{tcn_policy_forward.1} parent=1 // pred_check
      _
    $region19: #{tcn_policy_forward.1} parent=1 // pred_check_branch
      %34 = sbr.rel (0) target = $region21
    $region20: #{tcn_policy_forward.1} parent=1 // pred_region
      _
    $region21: #{tcn_policy_forward.1} parent=1 // pred_fallthru
      _
    // Predicated region
    $region22: #{tcn_policy_forward.1} parent=1 // pred_check
      _
    $region23: #{tcn_policy_forward.1} parent=1 // pred_check_branch
      %36 = sbr.rel (0) target = $region25
    $region24: #{tcn_policy_forward.1} parent=1 // pred_region
      _
    $region25: #{tcn_policy_forward.1} parent=1 // pred_fallthru
      _
    // Predicated region
    $region26: #{tcn_policy_forward.1} parent=1 // pred_check
      _
    $region27: #{tcn_policy_forward.1} parent=1 // pred_check_branch
      %38 = sbr.rel (0) target = $region29
    $region28: #{tcn_policy_forward.1} parent=1 // pred_region
      %s40 = ssub.s32 16, 16
      %41 = vsyncadd [#allocation3], %s40
      %s43 = sshll.u32 [#allocation2], 4
      %s44 = int_to_ptr.vmem [resolvable:$true] %s43
      %46 = dma.hbm_to_vmem [thread:$0]  %s6, 16, %s44, [#allocation3]
    $region29: #{tcn_policy_forward.1} parent=1 // pred_fallthru
      _
    // Predicated region
    $region30: #{tcn_policy_forward.1} parent=1 // pred_check
      _
    $region31: #{tcn_policy_forward.1} parent=1 // pred_check_branch
      %48 = sbr.rel (0) target = $region33
    $region32: #{tcn_policy_forward.1} parent=1 // pred_region
      _
    $region33: #{tcn_policy_forward.1} parent=1 // pred_fallthru
      _
    // Predicated region
    $region34: #{tcn_policy_forward.1} parent=1 // pred_check
      _
    $region35: #{tcn_policy_forward.1} parent=1 // pred_check_branch
      %50 = sbr.rel (0) target = $region37
    $region36: #{tcn_policy_forward.1} parent=1 // pred_region
      %s52 = ssub.s32 16, 16
      %53 = vsyncadd [#allocation5], %s52
      %s55 = sshll.u32 [#allocation4], 4
      %s56 = int_to_ptr.vmem [resolvable:$true] %s55
      %58 = dma.hbm_to_vmem [thread:$0]  %s8, 16, %s56, [#allocation5]
    $region37: #{tcn_policy_forward.1} parent=1 // pred_fallthru
      _
    // Predicated region
    $region38: #{tcn_policy_forward.1} parent=1 // pred_check
      _
    $region39: #{tcn_policy_forward.1} parent=1 // pred_check_branch
      %60 = sbr.rel (0) target = $region41
    $region40: #{tcn_policy_forward.1} parent=1 // pred_region
      _
    $region41: #{tcn_policy_forward.1} parent=1 // pred_fallthru
      _
    // Predicated region
    $region42: #{tcn_policy_forward.1} parent=1 // pred_check
      _
    $region43: #{tcn_policy_forward.1} parent=1 // pred_check_branch
      %62 = sbr.rel (0) target = $region45
    $region44: #{tcn_policy_forward.1} parent=1 // pred_region
      _
    $region45: #{tcn_policy_forward.1} parent=1 // pred_fallthru
      _
    // Predicated region
    $region46: #{tcn_policy_forward.1} parent=1 // pred_check
      _
    $region47: #{tcn_policy_forward.1} parent=1 // pred_check_branch
      %64 = sbr.rel (0) target = $region49
    $region48: #{tcn_policy_forward.1} parent=1 // pred_region
      %s66 = ssub.s32 16, 16
      %67 = vsyncadd [#allocation5], %s66
      %s69 = sshll.u32 [#allocation6], 4
      %s70 = int_to_ptr.vmem [resolvable:$true] %s69
      %72 = dma.hbm_to_vmem [thread:$0]  %s11, 16, %s70, [#allocation5]
    $region49: #{tcn_policy_forward.1} parent=1 // pred_fallthru
      _
    // Predicated region
    $region50: #{tcn_policy_forward.1} parent=1 // pred_check
      _
    $region51: #{tcn_policy_forward.1} parent=1 // pred_check_branch
      %74 = sbr.rel (0) target = $region53
    $region52: #{tcn_policy_forward.1} parent=1 // pred_region
      %s76 = ssub.s32 512, 512
      %77 = vsyncadd [#allocation8], %s76
      %s78 = sshll.u32 [#allocation7], 4
      %s79 = int_to_ptr.vmem [resolvable:$true] %s78
      %84 = dma.hbm_to_vmem [thread:$0]  %s12, 512, %s79, [#allocation8], 128, 128, 8
    $region53: #{tcn_policy_forward.1} parent=1 // pred_fallthru
      _
    // Predicated region
    $region54: #{tcn_policy_forward.1} parent=1 // pred_check
      _
    $region55: #{tcn_policy_forward.1} parent=1 // pred_check_branch
      %86 = sbr.rel (0) target = $region57
    $region56: #{tcn_policy_forward.1} parent=1 // pred_region
      %s88 = ssub.s32 16, 16
      %89 = vsyncadd [#allocation8], %s88
      %s91 = sshll.u32 [#allocation9], 4
      %s92 = int_to_ptr.vmem [resolvable:$true] %s91
      %94 = dma.hbm_to_vmem [thread:$0]  %s13, 16, %s92, [#allocation8]
    $region57: #{tcn_policy_forward.1} parent=1 // pred_fallthru
      _
    // Predicated region
    $region58: #{tcn_policy_forward.1} parent=1 // pred_check
      _
    $region59: #{tcn_policy_forward.1} parent=1 // pred_check_branch
      %96 = sbr.rel (0) target = $region61
    $region60: #{tcn_policy_forward.1} parent=1 // pred_region
      _
    $region61: #{tcn_policy_forward.1} parent=1 // pred_fallthru
      _
    // Predicated region
    $region62: #{tcn_policy_forward.1} parent=1 // pred_check
      _
    $region63: #{tcn_policy_forward.1} parent=1 // pred_check_branch
      %98 = sbr.rel (0) target = $region65
    $region64: #{tcn_policy_forward.1} parent=1 // pred_region
      %s100 = ssub.s32 16, 16
      %101 = vsyncadd [#allocation11], %s100
      %s103 = sshll.u32 [#allocation10], 4
      %s104 = int_to_ptr.vmem [resolvable:$true] %s103
      %106 = dma.hbm_to_vmem [thread:$0]  %s15, 16, %s104, [#allocation11]
    $region65: #{tcn_policy_forward.1} parent=1 // pred_fallthru
      _
    // Predicated region
    $region66: #{tcn_policy_forward.1} parent=1 // pred_check
      _
    $region67: #{tcn_policy_forward.1} parent=1 // pred_check_branch
      %108 = sbr.rel (0) target = $region69
    $region68: #{tcn_policy_forward.1} parent=1 // pred_region
      %109 = dma.done [#allocation3], 16
    $region69: #{tcn_policy_forward.1} parent=1 // pred_fallthru
      _
    // Predicated region
    $region70: #{tcn_policy_forward.1} parent=1 // pred_check
      _
    $region71: #{tcn_policy_forward.1} parent=1 // pred_check_branch
      %111 = sbr.rel (0) target = $region73
    $region72: #{tcn_policy_forward.1} parent=1 // pred_region
      %112 = dma.done [#allocation5], 16
    $region73: #{tcn_policy_forward.1} parent=1 // pred_fallthru
      _
    // Predicated region
    $region74: #{tcn_policy_forward.1} parent=1 // pred_check
      _
    $region75: #{tcn_policy_forward.1} parent=1 // pred_check_branch
      %114 = sbr.rel (0) target = $region77
    $region76: #{tcn_policy_forward.1} parent=1 // pred_region
      %115 = dma.done [#allocation5], 16
    $region77: #{tcn_policy_forward.1} parent=1 // pred_fallthru
      _
    // Predicated region
    $region78: #{tcn_policy_forward.1} parent=1 // pred_check
      _
    $region79: #{tcn_policy_forward.1} parent=1 // pred_check_branch
      %117 = sbr.rel (0) target = $region81
    $region80: #{tcn_policy_forward.1} parent=1 // pred_region
      %118 = dma.done [#allocation8], 512
    $region81: #{tcn_policy_forward.1} parent=1 // pred_fallthru
      _
    // Predicated region
    $region82: #{tcn_policy_forward.1} parent=1 // pred_check
      _
    $region83: #{tcn_policy_forward.1} parent=1 // pred_check_branch
      %120 = sbr.rel (0) target = $region85
    $region84: #{tcn_policy_forward.1} parent=1 // pred_region
      %121 = dma.done [#allocation8], 16
    $region85: #{tcn_policy_forward.1} parent=1 // pred_fallthru
      _
    // Predicated region
    $region86: #{tcn_policy_forward.1} parent=1 // pred_check
      _
    $region87: #{tcn_policy_forward.1} parent=1 // pred_check_branch
      %123 = sbr.rel (0) target = $region89
    $region88: #{tcn_policy_forward.1} parent=1 // pred_region
      %124 = dma.done [#allocation11], 16
    $region89: #{tcn_policy_forward.1} parent=1 // pred_fallthru
      _
    %v125 = vld [vmem:[%s0] sm:$0xff]
    %v126 = vld [vmem:[%s1] sm:$0xff]
    %v127 = vld [vmem:[%s1 + $0x8] sm:$0xff]
    %v128 = vld [vmem:[%s1 + $0x10] sm:$0xff]
    %v129 = vld [vmem:[%s1 + $0x18] sm:$0xff]
    %v130 = vld [vmem:[%s1 + $0x20] sm:$0xff]
    %v131 = vld [vmem:[%s1 + $0x28] sm:$0xff]
    %v132 = vld [vmem:[%s1 + $0x30] sm:$0xff]
    %v133 = vld [vmem:[%s1 + $0x38] sm:$0xff]
    %v134 = vld [vmem:[%s1 + $0x40] sm:$0xff]
    %v135 = vld [vmem:[%s1 + $0x48] sm:$0xff]
    %v136 = vld [vmem:[%s1 + $0x50] sm:$0xff]
    %v137 = vld [vmem:[%s1 + $0x58] sm:$0xff]
    %v138 = vld [vmem:[%s1 + $0x60] sm:$0xff]
    %v139 = vld [vmem:[%s1 + $0x68] sm:$0xff]
    %v140 = vld [vmem:[%s1 + $0x70] sm:$0xff]
    %v141 = vld [vmem:[%s1 + $0x78] sm:$0xff]
    %v142 = vld [vmem:[%s1 + $0x80] sm:$0xff]
    %v143 = vld [vmem:[%s1 + $0x88] sm:$0xff]
    %v144 = vld [vmem:[%s1 + $0x90] sm:$0xff]
    %v145 = vld [vmem:[%s1 + $0x98] sm:$0xff]
    %v146 = vld [vmem:[%s1 + $0xa0] sm:$0xff]
    %v147 = vld [vmem:[%s1 + $0xa8] sm:$0xff]
    %v148 = vld [vmem:[%s1 + $0xb0] sm:$0xff]
    %v149 = vld [vmem:[%s1 + $0xb8] sm:$0xff]
    %v150 = vld [vmem:[%s1 + $0xc0] sm:$0xff]
    %v151 = vld [vmem:[%s1 + $0xc8] sm:$0xff]
    %v152 = vld [vmem:[%s1 + $0xd0] sm:$0xff]
    %v153 = vld [vmem:[%s1 + $0xd8] sm:$0xff]
    %v154 = vld [vmem:[%s1 + $0xe0] sm:$0xff]
    %v155 = vld [vmem:[%s1 + $0xe8] sm:$0xff]
    %v156 = vld [vmem:[%s1 + $0xf0] sm:$0xff]
    %v157 = vld [vmem:[%s1 + $0xf8] sm:$0xff]
    %v158 = vld [vmem:[%s2] sm:$0x3]
    %v160 = vlaneseq
    %v161 = vshrl.u32 %v160, 7
    %v162 = vsub.s32 0, %v161
    %v163 = vrot.slane %v158, %v162
    %v164 = vlaneseq
    %v165 = vshrl.u32 %v164, 7
    %v166 = vsub.s32 1, %v165
    %v167 = vrot.slane %v158, %v166
    %170 = vmatprep.subr.mxu0 %v127
    %171 = vmatpush1.msra.mxu0 %v126
    %172 = vmatprep.subr.mxu0 %v129
    %173 = vmatpush1.msra.mxu0 %v128
    %174 = vmatprep.subr.mxu0 %v131
    %175 = vmatpush1.msra.mxu0 %v130
    %176 = vmatprep.subr.mxu0 %v133
    %177 = vmatpush1.msra.mxu0 %v132
    %178 = vmatprep.subr.mxu0 %v135
    %179 = vmatpush1.msra.mxu0 %v134
    %180 = vmatprep.subr.mxu0 %v137
    %181 = vmatpush1.msra.mxu0 %v136
    %182 = vmatprep.subr.mxu0 %v139
    %183 = vmatpush1.msra.mxu0 %v138
    %184 = vmatprep.subr.mxu0 %v141
    %185 = vmatpush1.msra.mxu0 %v140
    %186 = vmatprep.subr.mxu0 %v143
    %187 = vmatpush1.msra.mxu0 %v142
    %188 = vmatprep.subr.mxu0 %v145
    %189 = vmatpush1.msra.mxu0 %v144
    %190 = vmatprep.subr.mxu0 %v147
    %191 = vmatpush1.msra.mxu0 %v146
    %192 = vmatprep.subr.mxu0 %v149
    %193 = vmatpush1.msra.mxu0 %v148
    %194 = vmatprep.subr.mxu0 %v151
    %195 = vmatpush1.msra.mxu0 %v150
    %196 = vmatprep.subr.mxu0 %v153
    %197 = vmatpush1.msra.mxu0 %v152
    %198 = vmatprep.subr.mxu0 %v155
    %199 = vmatpush1.msra.mxu0 %v154
    %200 = vmatprep.subr.mxu0 %v157
    %201 = vmatpush1.msra.mxu0 %v156
    %202 = vmatprep.subr.mxu0 0.0
    %203 = vmatpush1.msra.mxu0 0.0
    %204 = vmatprep.subr.mxu0 0.0
    %205 = vmatpush1.msra.mxu0 0.0
    %206 = vmatprep.subr.mxu0 0.0
    %207 = vmatpush1.msra.mxu0 0.0
    %208 = vmatprep.subr.mxu0 0.0
    %209 = vmatpush1.msra.mxu0 0.0
    %210 = vmatprep.subr.mxu0 0.0
    %211 = vmatpush1.msra.mxu0 0.0
    %212 = vmatprep.subr.mxu0 0.0
    %213 = vmatpush1.msra.mxu0 0.0
    %214 = vmatprep.subr.mxu0 0.0
    %215 = vmatpush1.msra.mxu0 0.0
    %216 = vmatprep.subr.mxu0 0.0
    %217 = vmatpush1.msra.mxu0 0.0
    %218 = vmatprep.subr.mxu0 0.0
    %219 = vmatpush1.msra.mxu0 0.0
    %220 = vmatprep.subr.mxu0 0.0
    %221 = vmatpush1.msra.mxu0 0.0
    %222 = vmatprep.subr.mxu0 0.0
    %223 = vmatpush1.msra.mxu0 0.0
    %224 = vmatprep.subr.mxu0 0.0
    %225 = vmatpush1.msra.mxu0 0.0
    %226 = vmatprep.subr.mxu0 0.0
    %227 = vmatpush1.msra.mxu0 0.0
    %228 = vmatprep.subr.mxu0 0.0
    %229 = vmatpush1.msra.mxu0 0.0
    %230 = vmatprep.subr.mxu0 0.0
    %231 = vmatpush1.msra.mxu0 0.0
    %232 = vmatprep.subr.mxu0 0.0
    %233 = vmatpush1.msra.mxu0 0.0
    %234 = vmatprep.mubr.f32.mxu0 0.0
    %235 = vmatmul.mubr.f32.gmra.mrb[0].mxu0 %v125
    %v236 = vpop.f32.mrb[0].mxu0
    %v237 = vadd.f32 %v163, %v236
    %v238 = vpop.f32.mrb[0].mxu0
    %v239 = vadd.f32 %v167, %v238
    %240 = vdwg.mxu0
    %v241 = vtanh.pop %v237
    %v242 = vtanh.pop %v239
    %v243 = vld [vmem:[%s3] sm:$0xff]
    %v244 = vld [vmem:[%s3 + $0x8] sm:$0xff]
    %v245 = vld [vmem:[%s3 + $0x10] sm:$0xff]
    %v246 = vld [vmem:[%s3 + $0x18] sm:$0xff]
    %v247 = vld [vmem:[%s3 + $0x20] sm:$0xff]
    %v248 = vld [vmem:[%s3 + $0x28] sm:$0xff]
    %v249 = vld [vmem:[%s3 + $0x30] sm:$0xff]
    %v250 = vld [vmem:[%s3 + $0x38] sm:$0xff]
    %v251 = vld [vmem:[%s3 + $0x40] sm:$0xff]
    %v252 = vld [vmem:[%s3 + $0x48] sm:$0xff]
    %v253 = vld [vmem:[%s3 + $0x50] sm:$0xff]
    %v254 = vld [vmem:[%s3 + $0x58] sm:$0xff]
    %v255 = vld [vmem:[%s3 + $0x60] sm:$0xff]
    %v256 = vld [vmem:[%s3 + $0x68] sm:$0xff]
    %v257 = vld [vmem:[%s3 + $0x70] sm:$0xff]
    %v258 = vld [vmem:[%s3 + $0x78] sm:$0xff]
    %v259 = vld [vmem:[%s3 + $0x80] sm:$0xff]
    %v260 = vld [vmem:[%s3 + $0x88] sm:$0xff]
    %v261 = vld [vmem:[%s3 + $0x90] sm:$0xff]
    %v262 = vld [vmem:[%s3 + $0x98] sm:$0xff]
    %v263 = vld [vmem:[%s3 + $0xa0] sm:$0xff]
    %v264 = vld [vmem:[%s3 + $0xa8] sm:$0xff]
    %v265 = vld [vmem:[%s3 + $0xb0] sm:$0xff]
    %v266 = vld [vmem:[%s3 + $0xb8] sm:$0xff]
    %v267 = vld [vmem:[%s3 + $0xc0] sm:$0xff]
    %v268 = vld [vmem:[%s3 + $0xc8] sm:$0xff]
    %v269 = vld [vmem:[%s3 + $0xd0] sm:$0xff]
    %v270 = vld [vmem:[%s3 + $0xd8] sm:$0xff]
    %v271 = vld [vmem:[%s3 + $0xe0] sm:$0xff]
    %v272 = vld [vmem:[%s3 + $0xe8] sm:$0xff]
    %v273 = vld [vmem:[%s3 + $0xf0] sm:$0xff]
    %v274 = vld [vmem:[%s3 + $0xf8] sm:$0xff]
    %v275 = vld [vmem:[%s3 + $0x100] sm:$0xff]
    %v276 = vld [vmem:[%s3 + $0x108] sm:$0xff]
    %v277 = vld [vmem:[%s3 + $0x110] sm:$0xff]
    %v278 = vld [vmem:[%s3 + $0x118] sm:$0xff]
    %v279 = vld [vmem:[%s3 + $0x120] sm:$0xff]
    %v280 = vld [vmem:[%s3 + $0x128] sm:$0xff]
    %v281 = vld [vmem:[%s3 + $0x130] sm:$0xff]
    %v282 = vld [vmem:[%s3 + $0x138] sm:$0xff]
    %v283 = vld [vmem:[%s3 + $0x140] sm:$0xff]
    %v284 = vld [vmem:[%s3 + $0x148] sm:$0xff]
    %v285 = vld [vmem:[%s3 + $0x150] sm:$0xff]
    %v286 = vld [vmem:[%s3 + $0x158] sm:$0xff]
    %v287 = vld [vmem:[%s3 + $0x160] sm:$0xff]
    %v288 = vld [vmem:[%s3 + $0x168] sm:$0xff]
    %v289 = vld [vmem:[%s3 + $0x170] sm:$0xff]
    %v290 = vld [vmem:[%s3 + $0x178] sm:$0xff]
    %v291 = vld [vmem:[%s3 + $0x180] sm:$0xff]
    %v292 = vld [vmem:[%s3 + $0x188] sm:$0xff]
    %v293 = vld [vmem:[%s3 + $0x190] sm:$0xff]
    %v294 = vld [vmem:[%s3 + $0x198] sm:$0xff]
    %v295 = vld [vmem:[%s3 + $0x1a0] sm:$0xff]
    %v296 = vld [vmem:[%s3 + $0x1a8] sm:$0xff]
    %v297 = vld [vmem:[%s3 + $0x1b0] sm:$0xff]
    %v298 = vld [vmem:[%s3 + $0x1b8] sm:$0xff]
    %v299 = vld [vmem:[%s3 + $0x1c0] sm:$0xff]
    %v300 = vld [vmem:[%s3 + $0x1c8] sm:$0xff]
    %v301 = vld [vmem:[%s3 + $0x1d0] sm:$0xff]
    %v302 = vld [vmem:[%s3 + $0x1d8] sm:$0xff]
    %v303 = vld [vmem:[%s3 + $0x1e0] sm:$0xff]
    %v304 = vld [vmem:[%s3 + $0x1e8] sm:$0xff]
    %v305 = vld [vmem:[%s3 + $0x1f0] sm:$0xff]
    %v306 = vld [vmem:[%s3 + $0x1f8] sm:$0xff]
    %v307 = vld [vmem:[%s4] sm:$0x3]
    %v309 = vlaneseq
    %v310 = vshrl.u32 %v309, 7
    %v311 = vsub.s32 0, %v310
    %v312 = vrot.slane %v307, %v311
    %v313 = vlaneseq
    %v314 = vshrl.u32 %v313, 7
    %v315 = vsub.s32 1, %v314
    %v316 = vrot.slane %v307, %v315
    %319 = vmatprep.subr.mxu0 %v244
    %320 = vmatpush1.msra.mxu0 %v243
    %321 = vmatprep.subr.mxu0 %v246
    %322 = vmatpush1.msra.mxu0 %v245
    %323 = vmatprep.subr.mxu0 %v248
    %324 = vmatpush1.msra.mxu0 %v247
    %325 = vmatprep.subr.mxu0 %v250
    %326 = vmatpush1.msra.mxu0 %v249
    %327 = vmatprep.subr.mxu0 %v252
    %328 = vmatpush1.msra.mxu0 %v251
    %329 = vmatprep.subr.mxu0 %v254
    %330 = vmatpush1.msra.mxu0 %v253
    %331 = vmatprep.subr.mxu0 %v256
    %332 = vmatpush1.msra.mxu0 %v255
    %333 = vmatprep.subr.mxu0 %v258
    %334 = vmatpush1.msra.mxu0 %v257
    %335 = vmatprep.subr.mxu0 %v260
    %336 = vmatpush1.msra.mxu0 %v259
    %337 = vmatprep.subr.mxu0 %v262
    %338 = vmatpush1.msra.mxu0 %v261
    %339 = vmatprep.subr.mxu0 %v264
    %340 = vmatpush1.msra.mxu0 %v263
    %341 = vmatprep.subr.mxu0 %v266
    %342 = vmatpush1.msra.mxu0 %v265
    %343 = vmatprep.subr.mxu0 %v268
    %344 = vmatpush1.msra.mxu0 %v267
    %345 = vmatprep.subr.mxu0 %v270
    %346 = vmatpush1.msra.mxu0 %v269
    %347 = vmatprep.subr.mxu0 %v272
    %348 = vmatpush1.msra.mxu0 %v271
    %349 = vmatprep.subr.mxu0 %v274
    %350 = vmatpush1.msra.mxu0 %v273
    %351 = vmatprep.subr.mxu0 %v276
    %352 = vmatpush1.msra.mxu0 %v275
    %353 = vmatprep.subr.mxu0 %v278
    %354 = vmatpush1.msra.mxu0 %v277
    %355 = vmatprep.subr.mxu0 %v280
    %356 = vmatpush1.msra.mxu0 %v279
    %357 = vmatprep.subr.mxu0 %v282
    %358 = vmatpush1.msra.mxu0 %v281
    %359 = vmatprep.subr.mxu0 %v284
    %360 = vmatpush1.msra.mxu0 %v283
    %361 = vmatprep.subr.mxu0 %v286
    %362 = vmatpush1.msra.mxu0 %v285
    %363 = vmatprep.subr.mxu0 %v288
    %364 = vmatpush1.msra.mxu0 %v287
    %365 = vmatprep.subr.mxu0 %v290
    %366 = vmatpush1.msra.mxu0 %v289
    %367 = vmatprep.subr.mxu0 %v292
    %368 = vmatpush1.msra.mxu0 %v291
    %369 = vmatprep.subr.mxu0 %v294
    %370 = vmatpush1.msra.mxu0 %v293
    %371 = vmatprep.subr.mxu0 %v296
    %372 = vmatpush1.msra.mxu0 %v295
    %373 = vmatprep.subr.mxu0 %v298
    %374 = vmatpush1.msra.mxu0 %v297
    %375 = vmatprep.subr.mxu0 %v300
    %376 = vmatpush1.msra.mxu0 %v299
    %377 = vmatprep.subr.mxu0 %v302
    %378 = vmatpush1.msra.mxu0 %v301
    %379 = vmatprep.subr.mxu0 %v304
    %380 = vmatpush1.msra.mxu0 %v303
    %381 = vmatprep.subr.mxu0 %v306
    %382 = vmatpush1.msra.mxu0 %v305
    %383 = vmatprep.mubr.f32.mxu0 %v242
    %384 = vmatmul.mubr.f32.gmra.mrb[0].mxu0 %v241
    %v385 = vpop.f32.mrb[0].mxu0
    %v386 = vadd.f32 %v312, %v385
    %v387 = vpop.f32.mrb[0].mxu0
    %v388 = vadd.f32 %v316, %v387
    %389 = vdwg.mxu0
    %v390 = vtanh.pop %v386
    %v391 = vtanh.pop %v388
    %v392 = vld [vmem:[%s5] sm:$0xff]
    %v393 = vld [vmem:[%s5 + $0x8] sm:$0xff]
    %v394 = vld [vmem:[%s5 + $0x10] sm:$0xff]
    %v395 = vld [vmem:[%s5 + $0x18] sm:$0xff]
    %v396 = vld [vmem:[%s5 + $0x20] sm:$0xff]
    %v397 = vld [vmem:[%s5 + $0x28] sm:$0xff]
    %v398 = vld [vmem:[%s5 + $0x30] sm:$0xff]
    %v399 = vld [vmem:[%s5 + $0x38] sm:$0xff]
    %v400 = vld [vmem:[%s5 + $0x40] sm:$0xff]
    %v401 = vld [vmem:[%s5 + $0x48] sm:$0xff]
    %v402 = vld [vmem:[%s5 + $0x50] sm:$0xff]
    %v403 = vld [vmem:[%s5 + $0x58] sm:$0xff]
    %v404 = vld [vmem:[%s5 + $0x60] sm:$0xff]
    %v405 = vld [vmem:[%s5 + $0x68] sm:$0xff]
    %v406 = vld [vmem:[%s5 + $0x70] sm:$0xff]
    %v407 = vld [vmem:[%s5 + $0x78] sm:$0xff]
    %v408 = vld [vmem:[%s5 + $0x80] sm:$0xff]
    %v409 = vld [vmem:[%s5 + $0x88] sm:$0xff]
    %v410 = vld [vmem:[%s5 + $0x90] sm:$0xff]
    %v411 = vld [vmem:[%s5 + $0x98] sm:$0xff]
    %v412 = vld [vmem:[%s5 + $0xa0] sm:$0xff]
    %v413 = vld [vmem:[%s5 + $0xa8] sm:$0xff]
    %v414 = vld [vmem:[%s5 + $0xb0] sm:$0xff]
    %v415 = vld [vmem:[%s5 + $0xb8] sm:$0xff]
    %v416 = vld [vmem:[%s5 + $0xc0] sm:$0xff]
    %v417 = vld [vmem:[%s5 + $0xc8] sm:$0xff]
    %v418 = vld [vmem:[%s5 + $0xd0] sm:$0xff]
    %v419 = vld [vmem:[%s5 + $0xd8] sm:$0xff]
    %v420 = vld [vmem:[%s5 + $0xe0] sm:$0xff]
    %v421 = vld [vmem:[%s5 + $0xe8] sm:$0xff]
    %v422 = vld [vmem:[%s5 + $0xf0] sm:$0xff]
    %v423 = vld [vmem:[%s5 + $0xf8] sm:$0xff]
    %v424 = vld [vmem:[#allocation2] sm:$0x1]
    %v426 = vlaneseq
    %v427 = vshrl.u32 %v426, 7
    %v428 = vsub.s32 0, %v427
    %v429 = vrot.slane %v424, %v428
    %431 = vmatprep.subr.mxu0 0.0
    %432 = vmatpush1.msra.mxu0 %v392
    %433 = vmatprep.subr.mxu0 0.0
    %434 = vmatpush1.msra.mxu0 %v393
    %435 = vmatprep.subr.mxu0 0.0
    %436 = vmatpush1.msra.mxu0 %v394
    %437 = vmatprep.subr.mxu0 0.0
    %438 = vmatpush1.msra.mxu0 %v395
    %439 = vmatprep.subr.mxu0 0.0
    %440 = vmatpush1.msra.mxu0 %v396
    %441 = vmatprep.subr.mxu0 0.0
    %442 = vmatpush1.msra.mxu0 %v397
    %443 = vmatprep.subr.mxu0 0.0
    %444 = vmatpush1.msra.mxu0 %v398
    %445 = vmatprep.subr.mxu0 0.0
    %446 = vmatpush1.msra.mxu0 %v399
    %447 = vmatprep.subr.mxu0 0.0
    %448 = vmatpush1.msra.mxu0 %v400
    %449 = vmatprep.subr.mxu0 0.0
    %450 = vmatpush1.msra.mxu0 %v401
    %451 = vmatprep.subr.mxu0 0.0
    %452 = vmatpush1.msra.mxu0 %v402
    %453 = vmatprep.subr.mxu0 0.0
    %454 = vmatpush1.msra.mxu0 %v403
    %455 = vmatprep.subr.mxu0 0.0
    %456 = vmatpush1.msra.mxu0 %v404
    %457 = vmatprep.subr.mxu0 0.0
    %458 = vmatpush1.msra.mxu0 %v405
    %459 = vmatprep.subr.mxu0 0.0
    %460 = vmatpush1.msra.mxu0 %v406
    %461 = vmatprep.subr.mxu0 0.0
    %462 = vmatpush1.msra.mxu0 %v407
    %463 = vmatprep.subr.mxu0 0.0
    %464 = vmatpush1.msra.mxu0 %v408
    %465 = vmatprep.subr.mxu0 0.0
    %466 = vmatpush1.msra.mxu0 %v409
    %467 = vmatprep.subr.mxu0 0.0
    %468 = vmatpush1.msra.mxu0 %v410
    %469 = vmatprep.subr.mxu0 0.0
    %470 = vmatpush1.msra.mxu0 %v411
    %471 = vmatprep.subr.mxu0 0.0
    %472 = vmatpush1.msra.mxu0 %v412
    %473 = vmatprep.subr.mxu0 0.0
    %474 = vmatpush1.msra.mxu0 %v413
    %475 = vmatprep.subr.mxu0 0.0
    %476 = vmatpush1.msra.mxu0 %v414
    %477 = vmatprep.subr.mxu0 0.0
    %478 = vmatpush1.msra.mxu0 %v415
    %479 = vmatprep.subr.mxu0 0.0
    %480 = vmatpush1.msra.mxu0 %v416
    %481 = vmatprep.subr.mxu0 0.0
    %482 = vmatpush1.msra.mxu0 %v417
    %483 = vmatprep.subr.mxu0 0.0
    %484 = vmatpush1.msra.mxu0 %v418
    %485 = vmatprep.subr.mxu0 0.0
    %486 = vmatpush1.msra.mxu0 %v419
    %487 = vmatprep.subr.mxu0 0.0
    %488 = vmatpush1.msra.mxu0 %v420
    %489 = vmatprep.subr.mxu0 0.0
    %490 = vmatpush1.msra.mxu0 %v421
    %491 = vmatprep.subr.mxu0 0.0
    %492 = vmatpush1.msra.mxu0 %v422
    %493 = vmatprep.subr.mxu0 0.0
    %494 = vmatpush1.msra.mxu0 %v423
    %495 = vmatprep.mubr.f32.mxu0 %v391
    %496 = vmatmul.mubr.f32.gmra.mrb[0].mxu0 %v390
    %v497 = vpop.f32.mrb[0].mxu0
    %v498 = vadd.f32 %v429, %v497
    %v499 = vpop.f32.mrb[0].mxu0
    %500 = vdwg.mxu0
    %v501 = vtanh.pop %v498
    %v502 = vld [vmem:[%s7] sm:$0xff]
    %v503 = vld [vmem:[%s7 + $0x8] sm:$0xff]
    %v504 = vld [vmem:[%s7 + $0x10] sm:$0xff]
    %v505 = vld [vmem:[%s7 + $0x18] sm:$0xff]
    %v506 = vld [vmem:[%s7 + $0x20] sm:$0xff]
    %v507 = vld [vmem:[%s7 + $0x28] sm:$0xff]
    %v508 = vld [vmem:[%s7 + $0x30] sm:$0xff]
    %v509 = vld [vmem:[%s7 + $0x38] sm:$0xff]
    %v510 = vld [vmem:[%s7 + $0x40] sm:$0xff]
    %v511 = vld [vmem:[%s7 + $0x48] sm:$0xff]
    %v512 = vld [vmem:[%s7 + $0x50] sm:$0xff]
    %v513 = vld [vmem:[%s7 + $0x58] sm:$0xff]
    %v514 = vld [vmem:[#allocation4] sm:$0x1]
    %v516 = vlaneseq
    %v517 = vshrl.u32 %v516, 7
    %v518 = vsub.s32 0, %v517
    %v519 = vrot.slane %v514, %v518
    %vm521 = vcmask 785408
    %v523 = vsel %vm521, %v501, 0
    %525 = vmatprep.subr.mxu0 0.0
    %526 = vmatpush1.msra.mxu0 %v502
    %527 = vmatprep.subr.mxu0 0.0
    %528 = vmatpush1.msra.mxu0 %v503
    %529 = vmatprep.subr.mxu0 0.0
    %530 = vmatpush1.msra.mxu0 %v504
    %531 = vmatprep.subr.mxu0 0.0
    %532 = vmatpush1.msra.mxu0 %v505
    %533 = vmatprep.subr.mxu0 0.0
    %534 = vmatpush1.msra.mxu0 %v506
    %535 = vmatprep.subr.mxu0 0.0
    %536 = vmatpush1.msra.mxu0 %v507
    %537 = vmatprep.subr.mxu0 0.0
    %538 = vmatpush1.msra.mxu0 %v508
    %539 = vmatprep.subr.mxu0 0.0
    %540 = vmatpush1.msra.mxu0 %v509
    %541 = vmatprep.subr.mxu0 0.0
    %542 = vmatpush1.msra.mxu0 %v510
    %543 = vmatprep.subr.mxu0 0.0
    %544 = vmatpush1.msra.mxu0 %v511
    %545 = vmatprep.subr.mxu0 0.0
    %546 = vmatpush1.msra.mxu0 %v512
    %547 = vmatprep.subr.mxu0 0.0
    %548 = vmatpush1.msra.mxu0 %v513
    %549 = vmatprep.subr.mxu0 0.0
    %550 = vmatpush1.msra.mxu0 0.0
    %551 = vmatprep.subr.mxu0 0.0
    %552 = vmatpush1.msra.mxu0 0.0
    %553 = vmatprep.subr.mxu0 0.0
    %554 = vmatpush1.msra.mxu0 0.0
    %555 = vmatprep.subr.mxu0 0.0
    %556 = vmatpush1.msra.mxu0 0.0
    %557 = vmatprep.subr.mxu0 0.0
    %558 = vmatpush1.msra.mxu0 0.0
    %559 = vmatprep.subr.mxu0 0.0
    %560 = vmatpush1.msra.mxu0 0.0
    %561 = vmatprep.subr.mxu0 0.0
    %562 = vmatpush1.msra.mxu0 0.0
    %563 = vmatprep.subr.mxu0 0.0
    %564 = vmatpush1.msra.mxu0 0.0
    %565 = vmatprep.subr.mxu0 0.0
    %566 = vmatpush1.msra.mxu0 0.0
    %567 = vmatprep.subr.mxu0 0.0
    %568 = vmatpush1.msra.mxu0 0.0
    %569 = vmatprep.subr.mxu0 0.0
    %570 = vmatpush1.msra.mxu0 0.0
    %571 = vmatprep.subr.mxu0 0.0
    %572 = vmatpush1.msra.mxu0 0.0
    %573 = vmatprep.subr.mxu0 0.0
    %574 = vmatpush1.msra.mxu0 0.0
    %575 = vmatprep.subr.mxu0 0.0
    %576 = vmatpush1.msra.mxu0 0.0
    %577 = vmatprep.subr.mxu0 0.0
    %578 = vmatpush1.msra.mxu0 0.0
    %579 = vmatprep.subr.mxu0 0.0
    %580 = vmatpush1.msra.mxu0 0.0
    %581 = vmatprep.subr.mxu0 0.0
    %582 = vmatpush1.msra.mxu0 0.0
    %583 = vmatprep.subr.mxu0 0.0
    %584 = vmatpush1.msra.mxu0 0.0
    %585 = vmatprep.subr.mxu0 0.0
    %586 = vmatpush1.msra.mxu0 0.0
    %587 = vmatprep.subr.mxu0 0.0
    %588 = vmatpush1.msra.mxu0 0.0
    %589 = vmatprep.mubr.f32.mxu0 0.0
    %590 = vmatmul.mubr.f32.gmra.mrb[0].mxu0 %v523
    %v591 = vpop.f32.mrb[0].mxu0
    %v592 = vadd.f32 %v519, %v591
    %v593 = vpop.f32.mrb[0].mxu0
    %594 = vdwg.mxu0
    %v595 = vtanh.pop %v592
    %v596 = vld [vmem:[%s9] sm:$0xff]
    %v597 = vld [vmem:[%s9 + $0x8] sm:$0xff]
    %v598 = vld [vmem:[%s9 + $0x10] sm:$0xff]
    %v599 = vld [vmem:[%s9 + $0x18] sm:$0xff]
    %v600 = vld [vmem:[%s9 + $0x20] sm:$0xff]
    %v601 = vld [vmem:[%s9 + $0x28] sm:$0xff]
    %v602 = vld [vmem:[%s9 + $0x30] sm:$0xff]
    %v603 = vld [vmem:[%s9 + $0x38] sm:$0xff]
    %v604 = vld [vmem:[%s9 + $0x40] sm:$0xff]
    %v605 = vld [vmem:[%s9 + $0x48] sm:$0xff]
    %v606 = vld [vmem:[%s9 + $0x50] sm:$0xff]
    %v607 = vld [vmem:[%s9 + $0x58] sm:$0xff]
    %v608 = vld [vmem:[%s9 + $0x60] sm:$0xff]
    %v609 = vld [vmem:[%s9 + $0x68] sm:$0xff]
    %v610 = vld [vmem:[%s9 + $0x70] sm:$0xff]
    %v611 = vld [vmem:[%s9 + $0x78] sm:$0xff]
    %v612 = vld [vmem:[%s10] sm:$0xff]
    %v613 = vld [vmem:[%s10 + $0x8] sm:$0xff]
    %vm614 = vcmask 130048
    %v616 = vsel %vm614, %v595, 0
    %618 = vmatprep.subr.mxu0 0.0
    %619 = vmatpush1.msra.mxu0 %v612
    %620 = vmatprep.subr.mxu0 0.0
    %621 = vmatpush1.msra.mxu0 %v613
    %622 = vmatprep.subr.mxu0 0.0
    %623 = vmatpush1.msra.mxu0 0.0
    %624 = vmatprep.subr.mxu0 0.0
    %625 = vmatpush1.msra.mxu0 0.0
    %626 = vmatprep.subr.mxu0 0.0
    %627 = vmatpush1.msra.mxu0 0.0
    %628 = vmatprep.subr.mxu0 0.0
    %629 = vmatpush1.msra.mxu0 0.0
    %630 = vmatprep.subr.mxu0 0.0
    %631 = vmatpush1.msra.mxu0 0.0
    %632 = vmatprep.subr.mxu0 0.0
    %633 = vmatpush1.msra.mxu0 0.0
    %634 = vmatprep.subr.mxu0 0.0
    %635 = vmatpush1.msra.mxu0 0.0
    %636 = vmatprep.subr.mxu0 0.0
    %637 = vmatpush1.msra.mxu0 0.0
    %638 = vmatprep.subr.mxu0 0.0
    %639 = vmatpush1.msra.mxu0 0.0
    %640 = vmatprep.subr.mxu0 0.0
    %641 = vmatpush1.msra.mxu0 0.0
    %642 = vmatprep.subr.mxu0 0.0
    %643 = vmatpush1.msra.mxu0 0.0
    %644 = vmatprep.subr.mxu0 0.0
    %645 = vmatpush1.msra.mxu0 0.0
    %646 = vmatprep.subr.mxu0 0.0
    %647 = vmatpush1.msra.mxu0 0.0
    %648 = vmatprep.subr.mxu0 0.0
    %649 = vmatpush1.msra.mxu0 0.0
    %650 = vmatprep.subr.mxu0 0.0
    %651 = vmatpush1.msra.mxu0 0.0
    %652 = vmatprep.subr.mxu0 0.0
    %653 = vmatpush1.msra.mxu0 0.0
    %654 = vmatprep.subr.mxu0 0.0
    %655 = vmatpush1.msra.mxu0 0.0
    %656 = vmatprep.subr.mxu0 0.0
    %657 = vmatpush1.msra.mxu0 0.0
    %658 = vmatprep.subr.mxu0 0.0
    %659 = vmatpush1.msra.mxu0 0.0
    %660 = vmatprep.subr.mxu0 0.0
    %661 = vmatpush1.msra.mxu0 0.0
    %662 = vmatprep.subr.mxu0 0.0
    %663 = vmatpush1.msra.mxu0 0.0
    %664 = vmatprep.subr.mxu0 0.0
    %665 = vmatpush1.msra.mxu0 0.0
    %666 = vmatprep.subr.mxu0 0.0
    %667 = vmatpush1.msra.mxu0 0.0
    %668 = vmatprep.subr.mxu0 0.0
    %669 = vmatpush1.msra.mxu0 0.0
    %670 = vmatprep.subr.mxu0 0.0
    %671 = vmatpush1.msra.mxu0 0.0
    %672 = vmatprep.subr.mxu0 0.0
    %673 = vmatpush1.msra.mxu0 0.0
    %674 = vmatprep.subr.mxu0 0.0
    %675 = vmatpush1.msra.mxu0 0.0
    %676 = vmatprep.subr.mxu0 0.0
    %677 = vmatpush1.msra.mxu0 0.0
    %678 = vmatprep.subr.mxu0 0.0
    %679 = vmatpush1.msra.mxu0 0.0
    %680 = vmatprep.subr.mxu0 0.0
    %681 = vmatpush1.msra.mxu0 0.0
    %682 = vmatprep.mubr.f32.mxu0 0.0
    %683 = vmatmul.mubr.f32.gmra.mrb[0].mxu0 %v616
    %v684 = vpop.f32.mrb[0].mxu0
    %v685 = vadd.f32 0.0, %v684
    %v686 = vpop.f32.mrb[0].mxu0
    %687 = vdwg.mxu0
    %688 = vmatprep.subr.mxu0 0.0
    %689 = vmatpush1.msra.mxu0 %v596
    %690 = vmatprep.subr.mxu0 0.0
    %691 = vmatpush1.msra.mxu0 %v597
    %692 = vmatprep.subr.mxu0 0.0
    %693 = vmatpush1.msra.mxu0 %v598
    %694 = vmatprep.subr.mxu0 0.0
    %695 = vmatpush1.msra.mxu0 %v599
    %696 = vmatprep.subr.mxu0 0.0
    %697 = vmatpush1.msra.mxu0 %v600
    %698 = vmatprep.subr.mxu0 0.0
    %699 = vmatpush1.msra.mxu0 %v601
    %700 = vmatprep.subr.mxu0 0.0
    %701 = vmatpush1.msra.mxu0 %v602
    %702 = vmatprep.subr.mxu0 0.0
    %703 = vmatpush1.msra.mxu0 %v603
    %704 = vmatprep.subr.mxu0 0.0
    %705 = vmatpush1.msra.mxu0 %v604
    %706 = vmatprep.subr.mxu0 0.0
    %707 = vmatpush1.msra.mxu0 %v605
    %708 = vmatprep.subr.mxu0 0.0
    %709 = vmatpush1.msra.mxu0 %v606
    %710 = vmatprep.subr.mxu0 0.0
    %711 = vmatpush1.msra.mxu0 %v607
    %712 = vmatprep.subr.mxu0 0.0
    %713 = vmatpush1.msra.mxu0 %v608
    %714 = vmatprep.subr.mxu0 0.0
    %715 = vmatpush1.msra.mxu0 %v609
    %716 = vmatprep.subr.mxu0 0.0
    %717 = vmatpush1.msra.mxu0 %v610
    %718 = vmatprep.subr.mxu0 0.0
    %719 = vmatpush1.msra.mxu0 %v611
    %720 = vmatprep.subr.mxu0 0.0
    %721 = vmatpush1.msra.mxu0 0.0
    %722 = vmatprep.subr.mxu0 0.0
    %723 = vmatpush1.msra.mxu0 0.0
    %724 = vmatprep.subr.mxu0 0.0
    %725 = vmatpush1.msra.mxu0 0.0
    %726 = vmatprep.subr.mxu0 0.0
    %727 = vmatpush1.msra.mxu0 0.0
    %728 = vmatprep.subr.mxu0 0.0
    %729 = vmatpush1.msra.mxu0 0.0
    %730 = vmatprep.subr.mxu0 0.0
    %731 = vmatpush1.msra.mxu0 0.0
    %732 = vmatprep.subr.mxu0 0.0
    %733 = vmatpush1.msra.mxu0 0.0
    %734 = vmatprep.subr.mxu0 0.0
    %735 = vmatpush1.msra.mxu0 0.0
    %736 = vmatprep.subr.mxu0 0.0
    %737 = vmatpush1.msra.mxu0 0.0
    %738 = vmatprep.subr.mxu0 0.0
    %739 = vmatpush1.msra.mxu0 0.0
    %740 = vmatprep.subr.mxu0 0.0
    %741 = vmatpush1.msra.mxu0 0.0
    %742 = vmatprep.subr.mxu0 0.0
    %743 = vmatpush1.msra.mxu0 0.0
    %744 = vmatprep.subr.mxu0 0.0
    %745 = vmatpush1.msra.mxu0 0.0
    %746 = vmatprep.subr.mxu0 0.0
    %747 = vmatpush1.msra.mxu0 0.0
    %748 = vmatprep.subr.mxu0 0.0
    %749 = vmatpush1.msra.mxu0 0.0
    %750 = vmatprep.subr.mxu0 0.0
    %751 = vmatpush1.msra.mxu0 0.0
    %752 = vmatprep.mubr.f32.mxu0 0.0
    %753 = vmatmul.mubr.f32.gmra.mrb[0].mxu0 %v125
    %v754 = vpop.f32.mrb[0].mxu0
    %v755 = vadd.f32 %v685, %v754
    %v756 = vpop.f32.mrb[0].mxu0
    %757 = vdwg.mxu0
    %v758 = vld [vmem:[#allocation6] sm:$0x1]
    %v760 = vlaneseq
    %v761 = vshrl.u32 %v760, 7
    %v762 = vsub.s32 0, %v761
    %v763 = vrot.slane %v758, %v762
    %v765 = vadd.f32 %v755, %v763
    %v766 = vtanh.pop %v765
    %v767 = vld [vmem:[#allocation7] sm:$0xff]
    %v768 = vld [vmem:[#allocation7 + $0x8] sm:$0xff]
    %v769 = vld [vmem:[#allocation7 + $0x10] sm:$0xff]
    %v770 = vld [vmem:[#allocation7 + $0x18] sm:$0xff]
    %v771 = vld [vmem:[#allocation9] sm:$0x1]
    %v773 = vlaneseq
    %v774 = vshrl.u32 %v773, 7
    %v775 = vsub.s32 0, %v774
    %v776 = vrot.slane %v771, %v775
    %vm778 = vcmask 261120
    %v780 = vsel %vm778, %v766, 0
    %782 = vmatprep.subr.mxu0 0.0
    %783 = vmatpush1.msra.mxu0 %v767
    %784 = vmatprep.subr.mxu0 0.0
    %785 = vmatpush1.msra.mxu0 %v768
    %786 = vmatprep.subr.mxu0 0.0
    %787 = vmatpush1.msra.mxu0 %v769
    %788 = vmatprep.subr.mxu0 0.0
    %789 = vmatpush1.msra.mxu0 %v770
    %790 = vmatprep.subr.mxu0 0.0
    %791 = vmatpush1.msra.mxu0 0.0
    %792 = vmatprep.subr.mxu0 0.0
    %793 = vmatpush1.msra.mxu0 0.0
    %794 = vmatprep.subr.mxu0 0.0
    %795 = vmatpush1.msra.mxu0 0.0
    %796 = vmatprep.subr.mxu0 0.0
    %797 = vmatpush1.msra.mxu0 0.0
    %798 = vmatprep.subr.mxu0 0.0
    %799 = vmatpush1.msra.mxu0 0.0
    %800 = vmatprep.subr.mxu0 0.0
    %801 = vmatpush1.msra.mxu0 0.0
    %802 = vmatprep.subr.mxu0 0.0
    %803 = vmatpush1.msra.mxu0 0.0
    %804 = vmatprep.subr.mxu0 0.0
    %805 = vmatpush1.msra.mxu0 0.0
    %806 = vmatprep.subr.mxu0 0.0
    %807 = vmatpush1.msra.mxu0 0.0
    %808 = vmatprep.subr.mxu0 0.0
    %809 = vmatpush1.msra.mxu0 0.0
    %810 = vmatprep.subr.mxu0 0.0
    %811 = vmatpush1.msra.mxu0 0.0
    %812 = vmatprep.subr.mxu0 0.0
    %813 = vmatpush1.msra.mxu0 0.0
    %814 = vmatprep.subr.mxu0 0.0
    %815 = vmatpush1.msra.mxu0 0.0
    %816 = vmatprep.subr.mxu0 0.0
    %817 = vmatpush1.msra.mxu0 0.0
    %818 = vmatprep.subr.mxu0 0.0
    %819 = vmatpush1.msra.mxu0 0.0
    %820 = vmatprep.subr.mxu0 0.0
    %821 = vmatpush1.msra.mxu0 0.0
    %822 = vmatprep.subr.mxu0 0.0
    %823 = vmatpush1.msra.mxu0 0.0
    %824 = vmatprep.subr.mxu0 0.0
    %825 = vmatpush1.msra.mxu0 0.0
    %826 = vmatprep.subr.mxu0 0.0
    %827 = vmatpush1.msra.mxu0 0.0
    %828 = vmatprep.subr.mxu0 0.0
    %829 = vmatpush1.msra.mxu0 0.0
    %830 = vmatprep.subr.mxu0 0.0
    %831 = vmatpush1.msra.mxu0 0.0
    %832 = vmatprep.subr.mxu0 0.0
    %833 = vmatpush1.msra.mxu0 0.0
    %834 = vmatprep.subr.mxu0 0.0
    %835 = vmatpush1.msra.mxu0 0.0
    %836 = vmatprep.subr.mxu0 0.0
    %837 = vmatpush1.msra.mxu0 0.0
    %838 = vmatprep.subr.mxu0 0.0
    %839 = vmatpush1.msra.mxu0 0.0
    %840 = vmatprep.subr.mxu0 0.0
    %841 = vmatpush1.msra.mxu0 0.0
    %842 = vmatprep.subr.mxu0 0.0
    %843 = vmatpush1.msra.mxu0 0.0
    %844 = vmatprep.subr.mxu0 0.0
    %845 = vmatpush1.msra.mxu0 0.0
    %846 = vmatprep.mubr.f32.mxu0 0.0
    %847 = vmatmul.mubr.f32.gmra.mrb[0].mxu0 %v780
    %v848 = vpop.f32.mrb[0].mxu0
    %v849 = vadd.f32 %v776, %v848
    %v850 = vpop.f32.mrb[0].mxu0
    %851 = vdwg.mxu0
    %v852 = vtanh.pop %v849
    %v853 = vld [vmem:[%s14] sm:$0xff]
    %v854 = vld [vmem:[%s14 + $0x8] sm:$0xff]
    %v855 = vld [vmem:[%s14 + $0x10] sm:$0xff]
    %v856 = vld [vmem:[%s14 + $0x18] sm:$0xff]
    %v857 = vld [vmem:[#allocation10] sm:$0x1]
    %v859 = vlaneseq
    %v860 = vshrl.u32 %v859, 7
    %v861 = vsub.s32 0, %v860
    %v862 = vrot.slane %v857, %v861
    %v865 = vsel %vm778, %v852, 0
    %867 = vmatprep.subr.mxu0 0.0
    %868 = vmatpush1.msra.mxu0 %v853
    %869 = vmatprep.subr.mxu0 0.0
    %870 = vmatpush1.msra.mxu0 %v854
    %871 = vmatprep.subr.mxu0 0.0
    %872 = vmatpush1.msra.mxu0 %v855
    %873 = vmatprep.subr.mxu0 0.0
    %874 = vmatpush1.msra.mxu0 %v856
    %875 = vmatprep.subr.mxu0 0.0
    %876 = vmatpush1.msra.mxu0 0.0
    %877 = vmatprep.subr.mxu0 0.0
    %878 = vmatpush1.msra.mxu0 0.0
    %879 = vmatprep.subr.mxu0 0.0
    %880 = vmatpush1.msra.mxu0 0.0
    %881 = vmatprep.subr.mxu0 0.0
    %882 = vmatpush1.msra.mxu0 0.0
    %883 = vmatprep.subr.mxu0 0.0
    %884 = vmatpush1.msra.mxu0 0.0
    %885 = vmatprep.subr.mxu0 0.0
    %886 = vmatpush1.msra.mxu0 0.0
    %887 = vmatprep.subr.mxu0 0.0
    %888 = vmatpush1.msra.mxu0 0.0
    %889 = vmatprep.subr.mxu0 0.0
    %890 = vmatpush1.msra.mxu0 0.0
    %891 = vmatprep.subr.mxu0 0.0
    %892 = vmatpush1.msra.mxu0 0.0
    %893 = vmatprep.subr.mxu0 0.0
    %894 = vmatpush1.msra.mxu0 0.0
    %895 = vmatprep.subr.mxu0 0.0
    %896 = vmatpush1.msra.mxu0 0.0
    %897 = vmatprep.subr.mxu0 0.0
    %898 = vmatpush1.msra.mxu0 0.0
    %899 = vmatprep.subr.mxu0 0.0
    %900 = vmatpush1.msra.mxu0 0.0
    %901 = vmatprep.subr.mxu0 0.0
    %902 = vmatpush1.msra.mxu0 0.0
    %903 = vmatprep.subr.mxu0 0.0
    %904 = vmatpush1.msra.mxu0 0.0
    %905 = vmatprep.subr.mxu0 0.0
    %906 = vmatpush1.msra.mxu0 0.0
    %907 = vmatprep.subr.mxu0 0.0
    %908 = vmatpush1.msra.mxu0 0.0
    %909 = vmatprep.subr.mxu0 0.0
    %910 = vmatpush1.msra.mxu0 0.0
    %911 = vmatprep.subr.mxu0 0.0
    %912 = vmatpush1.msra.mxu0 0.0
    %913 = vmatprep.subr.mxu0 0.0
    %914 = vmatpush1.msra.mxu0 0.0
    %915 = vmatprep.subr.mxu0 0.0
    %916 = vmatpush1.msra.mxu0 0.0
    %917 = vmatprep.subr.mxu0 0.0
    %918 = vmatpush1.msra.mxu0 0.0
    %919 = vmatprep.subr.mxu0 0.0
    %920 = vmatpush1.msra.mxu0 0.0
    %921 = vmatprep.subr.mxu0 0.0
    %922 = vmatpush1.msra.mxu0 0.0
    %923 = vmatprep.subr.mxu0 0.0
    %924 = vmatpush1.msra.mxu0 0.0
    %925 = vmatprep.subr.mxu0 0.0
    %926 = vmatpush1.msra.mxu0 0.0
    %927 = vmatprep.subr.mxu0 0.0
    %928 = vmatpush1.msra.mxu0 0.0
    %929 = vmatprep.subr.mxu0 0.0
    %930 = vmatpush1.msra.mxu0 0.0
    %931 = vmatprep.mubr.f32.mxu0 0.0
    %932 = vmatmul.mubr.f32.gmra.mrb[0].mxu0 %v865
    %v933 = vpop.f32.mrb[0].mxu0
    %v934 = vadd.f32 %v862, %v933
    %v935 = vpop.f32.mrb[0].mxu0
    %936 = vdwg.mxu0
    %vm937 = vcmask 64512
    %938 = vst.msk [vmem:[%s16] sm:$0xff] %vm937, %v934
    // Predicated region
    $region90: #{tcn_policy_forward.1} parent=1 // pred_check
      _
    $region91: #{tcn_policy_forward.1} parent=1 // pred_check_branch
      %940 = sbr.rel (0) target = $region93
    $region92: #{tcn_policy_forward.1} parent=1 // pred_region
      _
    $region93: #{tcn_policy_forward.1} parent=1 // pred_fallthru
      _
    // Predicated region
    $region94: #{tcn_policy_forward.1} parent=1 // pred_check
      _
    $region95: #{tcn_policy_forward.1} parent=1 // pred_check_branch
      %942 = sbr.rel (0) target = $region97
    $region96: #{tcn_policy_forward.1} parent=1 // pred_region
      _
    $region97: #{tcn_policy_forward.1} parent=1 // pred_fallthru
      _
    %943 = vsyncpa [#allocation3], 1
    %944 = vsyncpa [#allocation5], 1
    %945 = vsyncpa [#allocation8], 1
    %946 = vsyncpa [#allocation11], 1

</llo_original>
